<compile_context>
chip_gen: v5e
topology: v5e:2x2
jax: 0.10.0
libtpu: 0.0.40
codegen_flags: <defaults>
</compile_context>

<pallas_src>
import functools

import jax
import jax.numpy as jnp
from jax.experimental import pallas as pl
from jax.experimental.pallas import tpu as pltpu


def _dice_partial_kernel(x_ref, g_ref, out_ref, *, hw, t_hw, needs_mask):
    """One (nb, C, T) block -> (3, C) partial sums.

    out_ref block (1, 1, 3, C): row 0 = sum(p*gt), row 1 = sum(p*p), row 2 = sum(gt).
    """
    x = x_ref[...].astype(jnp.float32)          # (nb, C, T)
    g = g_ref[...].astype(jnp.float32)          # (nb, C, T)

    # Numerically stable softmax over the channel (sublane) axis, per lane.
    m = jnp.max(x, axis=1, keepdims=True)       # (nb, 1, T)
    e = jnp.exp(x - m)                          # (nb, C, T)
    s = jnp.sum(e, axis=1, keepdims=True)       # (nb, 1, T)
    # One divide per lane + C multiplies instead of C divides per lane.
    # (pl.reciprocal(s, approx=True) would move it to the EUP slot but adds
    #  ~1e-4 relative error; exact keeps us within the 1e-5 check.)
    p = e * (1.0 / s)                           # (nb, C, T)

    if needs_mask:
        # Only the last spatial tile is partial; its tail lanes hold stale VMEM
        # garbage.  Masking p (not just g) is load-bearing: it zeroes garbage
        # softmax values feeding sum(p*p) and sum(p*g); masking g covers sum(g).
        # (jnp.where is a select, so NaN/Inf in masked lanes does not propagate.)
        h = pl.program_id(1)
        lane = jax.lax.broadcasted_iota(jnp.int32, p.shape, 2)
        valid = (h * t_hw + lane) < hw
        p = jnp.where(valid, p, 0.0)
        g = jnp.where(valid, g, 0.0)

    # Single output block per step (one writeback DMA).
    out_ref[0, 0, 0] = jnp.sum(p * g, axis=(0, 2))   # inse per class
    out_ref[0, 0, 1] = jnp.sum(p * p, axis=(0, 2))   # l per class
    out_ref[0, 0, 2] = jnp.sum(g, axis=(0, 2))       # r per class


def _vmem_capacity_bytes():
    try:
        return int(pltpu.get_tpu_info().vmem_capacity_bytes)
    except Exception:
        return 64 * 1024 * 1024   # conservative (v7x-sized) fallback


def _round_up(v, m):
    return -(-v // m) * m


def dice_loss_multi_class_pallas(logits, gt,
                                 loss_lambda=(1.0, 2.0, 2.0, 2.0, 2.0),
                                 eps=1e-7,
                                 t_hw_max=None):
    """logits, gt: (N, C, H, W); returns scalar loss (matches the torch module)."""
    N, C, H, W = logits.shape
    assert gt.shape == logits.shape
    assert C == len(loss_lambda), "module is defined for 5 classes"
    HW = H * W

    # Generation-aware tile / VMEM budget: v5e/v6e have 128 MiB VMEM, v7x 64 MiB.
    big_vmem = _vmem_capacity_bytes() >= 100 * 1024 * 1024
    if t_hw_max is None:
        t_hw_max = 262144 if big_vmem else 131072
    t_hw_max = max(128, (t_hw_max // 128) * 128)
    vmem_limit = (64 if big_vmem else 40) * 1024 * 1024

    x = logits.reshape(N, C, HW)
    g = gt.reshape(N, C, HW)

    if HW <= t_hw_max:
        # Whole spatial extent per step; block several batch samples to
        # amortize the fixed per-step cost when HW is small.
        t = HW
        nb = max(1, t_hw_max // max(HW, 1))
        if N >= 2:
            nb = min(nb, N // 2)          # keep >= 2 grid steps for v7x megacore
        nb = max(1, min(nb, N))
        while N % nb:                      # largest divisor of N <= target
            nb -= 1
    else:
        # Lane-aligned spatial tiling; partial last tile is masked in-kernel.
        t = t_hw_max
        nb = 1

    grid_n = N // nb
    n_tiles = pl.cdiv(HW, t)

    # If everything collapsed to a single step (only possible for N==1) but the
    # image is sizeable, split spatially so both v7x TensorCores get work.
    if grid_n * n_tiles == 1 and HW > 4096:
        t = _round_up((HW + 1) // 2, 128)
        n_tiles = pl.cdiv(HW, t)

    needs_mask = (HW % t) != 0

    kernel = functools.partial(_dice_partial_kernel,
                               hw=HW, t_hw=t, needs_mask=needs_mask)

    out_shape = jax.ShapeDtypeStruct((grid_n, n_tiles, 3, C), jnp.float32)

    cost = pl.CostEstimate(
        flops=12 * N * C * HW,
        transcendentals=N * C * HW,
        bytes_accessed=(x.size * x.dtype.itemsize
                        + g.size * g.dtype.itemsize
                        + grid_n * n_tiles * 3 * C * 4),
    )

    parts = pl.pallas_call(
        kernel,
        out_shape=out_shape,
        grid_spec=pltpu.PrefetchScalarGridSpec(
            num_scalar_prefetch=0,
            grid=(grid_n, n_tiles),
            in_specs=[
                pl.BlockSpec((nb, C, t), lambda n, h: (n, 0, h)),
                pl.BlockSpec((nb, C, t), lambda n, h: (n, 0, h)),
            ],
            out_specs=pl.BlockSpec((1, 1, 3, C), lambda n, h: (n, h, 0, 0)),
        ),
        compiler_params=pltpu.CompilerParams(
            dimension_semantics=("parallel", "parallel"),
            vmem_limit_bytes=vmem_limit,
        ),
        cost_estimate=cost,
    )(x, g)

    # Tiny scalar epilogue in plain JAX: combine partial sums (15 scalars).
    sums = jnp.sum(parts, axis=(0, 1))          # (3, C)
    inse, l, r = sums[0], sums[1], sums[2]
    lam = jnp.asarray(loss_lambda, dtype=jnp.float32)
    dice = jnp.sum(2.0 * (inse + eps) / (l + r + eps) * lam / 9.0)
    return 1.0 - dice / 5.0


def dice_loss_reference(logits, gt, loss_lambda=(1.0, 2.0, 2.0, 2.0, 2.0),
                        eps=1e-7):
    # Pure-JAX reference for validation (mirrors the PyTorch forward).
    p = jax.nn.softmax(logits, axis=1)
    inse = jnp.sum(p * gt, axis=(0, 2, 3))
    l = jnp.sum(p * p, axis=(0, 2, 3))
    r = jnp.sum(gt, axis=(0, 2, 3))
    lam = jnp.asarray(loss_lambda, dtype=jnp.float32)
    dice = jnp.sum(2.0 * (inse + eps) / (l + r + eps) * lam / 9.0)
    return 1.0 - dice / 5.0


def _make_inputs(key, n, c, h, w):
    kl, kb = jax.random.split(key)
    logits = jax.random.normal(kl, (n, c, h, w), dtype=jnp.float32)
    labels = jax.random.randint(kb, (n, h, w), 0, c)
    gt = jnp.transpose(jax.nn.one_hot(labels, c, dtype=jnp.float32),
                       (0, 3, 1, 2))            # (N, C, H, W) one-hot
    return logits, gt


if __name__ == "__main__":
    C = 5  # module hard-codes 5 classes (loss_lambda has 5 entries)

    # Primary small test case.
    logits, gt = _make_inputs(jax.random.PRNGKey(0), 2, C, 16, 16)
    loss = dice_loss_multi_class_pallas(logits, gt)
    jax.block_until_ready(loss)
    ref = dice_loss_reference(logits, gt)
    assert loss.shape == ()
    assert jnp.allclose(loss, ref, atol=1e-5, rtol=1e-5), (loss, ref)

    # Exercise the batch-blocked, masked-tail and forced-split paths
    # (all small shapes; t_hw_max forced down to trigger tiling).
    extra_cases = [
        (4, 16, 16, 1024),   # nb=2 batch blocking, single spatial tile
        (2, 33, 20, 256),    # 3 spatial tiles with masked partial tail
        (1, 96, 96, None),   # N==1 -> forced 2-way spatial split
    ]
    for idx, (n2, h2, w2, thw) in enumerate(extra_cases):
        lg, g2 = _make_inputs(jax.random.PRNGKey(idx + 1), n2, C, h2, w2)
        got = dice_loss_multi_class_pallas(lg, g2, t_hw_max=thw)
        jax.block_until_ready(got)
        want = dice_loss_reference(lg, g2)
        assert jnp.allclose(got, want, atol=1e-5, rtol=1e-5), (thw, got, want)

    print("KERNEL_OK")
</pallas_src>

<mosaic_0001>
module attributes {stable_mosaic.version = 11 : i64} {
  func.func @_dice_partial_kernel(%arg0: i32, %arg1: i32, %arg2: memref<1x5x256xf32, #tpu.memory_space<vmem>>, %arg3: memref<1x5x256xf32, #tpu.memory_space<vmem>>, %arg4: memref<1x1x3x5xf32, #tpu.memory_space<vmem>>) attributes {dimension_semantics = [#tpu.dimension_semantics<parallel>, #tpu.dimension_semantics<parallel>], iteration_bounds = array<i64: 2, 1>, scalar_prefetch = 0 : i64, scratch_operands = 0 : i64, tpu.core_type = #tpu.core_type<tc>, window_params = [{transform_indices = @transform_0, window_bounds = array<i64: 1, 5, 256>}, {transform_indices = @transform_1, window_bounds = array<i64: 1, 5, 256>}, {transform_indices = @transform_2, window_bounds = array<i64: 1, 1, 3, 5>}]} {
    %c0 = arith.constant 0 : index
    %c0_0 = arith.constant 0 : index
    %c0_1 = arith.constant 0 : index
    %0 = vector.load %arg2[%c0, %c0_0, %c0_1] : memref<1x5x256xf32, #tpu.memory_space<vmem>>, vector<1x5x256xf32>
    %c0_2 = arith.constant 0 : index
    %c0_3 = arith.constant 0 : index
    %c0_4 = arith.constant 0 : index
    %1 = vector.load %arg3[%c0_2, %c0_3, %c0_4] : memref<1x5x256xf32, #tpu.memory_space<vmem>>, vector<1x5x256xf32>
    %cst = arith.constant dense<0xFF800000> : vector<1x256xf32>
    %2 = vector.multi_reduction <maximumf>, %0, %cst [1] : vector<1x5x256xf32> to vector<1x256xf32>
    %3 = vector.shape_cast %2 : vector<1x256xf32> to vector<1x1x256xf32>
    %4 = vector.broadcast %3 : vector<1x1x256xf32> to vector<1x5x256xf32>
    %5 = arith.subf %0, %4 : vector<1x5x256xf32>
    %6 = math.exp %5 : vector<1x5x256xf32>
    %cst_5 = arith.constant dense<0.000000e+00> : vector<1x256xf32>
    %7 = vector.multi_reduction <add>, %6, %cst_5 [1] : vector<1x5x256xf32> to vector<1x256xf32>
    %8 = vector.shape_cast %7 : vector<1x256xf32> to vector<1x1x256xf32>
    %cst_6 = arith.constant 1.000000e+00 : f32
    %9 = vector.broadcast %cst_6 : f32 to vector<1x1x256xf32>
    %10 = arith.divf %9, %8 : vector<1x1x256xf32>
    %11 = vector.broadcast %10 : vector<1x1x256xf32> to vector<1x5x256xf32>
    %12 = arith.mulf %6, %11 : vector<1x5x256xf32>
    %13 = arith.mulf %12, %1 : vector<1x5x256xf32>
    %cst_7 = arith.constant dense<0.000000e+00> : vector<5xf32>
    %14 = vector.multi_reduction <add>, %13, %cst_7 [0, 2] : vector<1x5x256xf32> to vector<5xf32>
    %c0_8 = arith.constant 0 : index
    %c0_9 = arith.constant 0 : index
    %c0_10 = arith.constant 0 : index
    %c0_11 = arith.constant 0 : index
    %15 = vector.load %arg4[%c0_8, %c0_9, %c0_10, %c0_11] : memref<1x1x3x5xf32, #tpu.memory_space<vmem>>, vector<1x1x1x5xf32>
    %16 = vector.shape_cast %15 : vector<1x1x1x5xf32> to vector<5xf32>
    %17 = vector.shape_cast %14 : vector<5xf32> to vector<1x1x1x5xf32>
    tpu.vector_store %arg4[%c0_8, %c0_9, %c0_10, %c0_11], %17 {strides = array<i32>} : memref<1x1x3x5xf32, #tpu.memory_space<vmem>>, vector<1x1x1x5xf32>,
    %18 = arith.mulf %12, %12 : vector<1x5x256xf32>
    %cst_12 = arith.constant dense<0.000000e+00> : vector<5xf32>
    %19 = vector.multi_reduction <add>, %18, %cst_12 [0, 2] : vector<1x5x256xf32> to vector<5xf32>
    %c0_13 = arith.constant 0 : index
    %c0_14 = arith.constant 0 : index
    %c1 = arith.constant 1 : index
    %c0_15 = arith.constant 0 : index
    %20 = vector.load %arg4[%c0_13, %c0_14, %c1, %c0_15] : memref<1x1x3x5xf32, #tpu.memory_space<vmem>>, vector<1x1x1x5xf32>
    %21 = vector.shape_cast %20 : vector<1x1x1x5xf32> to vector<5xf32>
    %22 = vector.shape_cast %19 : vector<5xf32> to vector<1x1x1x5xf32>
    tpu.vector_store %arg4[%c0_13, %c0_14, %c1, %c0_15], %22 {strides = array<i32>} : memref<1x1x3x5xf32, #tpu.memory_space<vmem>>, vector<1x1x1x5xf32>,
    %cst_16 = arith.constant dense<0.000000e+00> : vector<5xf32>
    %23 = vector.multi_reduction <add>, %1, %cst_16 [0, 2] : vector<1x5x256xf32> to vector<5xf32>
    %c0_17 = arith.constant 0 : index
    %c0_18 = arith.constant 0 : index
    %c2 = arith.constant 2 : index
    %c0_19 = arith.constant 0 : index
    %24 = vector.load %arg4[%c0_17, %c0_18, %c2, %c0_19] : memref<1x1x3x5xf32, #tpu.memory_space<vmem>>, vector<1x1x1x5xf32>
    %25 = vector.shape_cast %24 : vector<1x1x1x5xf32> to vector<5xf32>
    %26 = vector.shape_cast %23 : vector<5xf32> to vector<1x1x1x5xf32>
    tpu.vector_store %arg4[%c0_17, %c0_18, %c2, %c0_19], %26 {strides = array<i32>} : memref<1x1x3x5xf32, #tpu.memory_space<vmem>>, vector<1x1x1x5xf32>,
    return
  }
  func.func @transform_0(%arg0: i32, %arg1: i32) -> (i32, i32, i32) {
    %c0_i32 = arith.constant 0 : i32
    %c0_i32_0 = arith.constant 0 : i32
    return %arg0, %c0_i32, %arg1 : i32, i32, i32
  }
  func.func @transform_1(%arg0: i32, %arg1: i32) -> (i32, i32, i32) {
    %c0_i32 = arith.constant 0 : i32
    %c0_i32_0 = arith.constant 0 : i32
    return %arg0, %c0_i32, %arg1 : i32, i32, i32
  }
  func.func @transform_2(%arg0: i32, %arg1: i32) -> (i32, i32, i32, i32) {
    %c0_i32 = arith.constant 0 : i32
    %c0_i32_0 = arith.constant 0 : i32
    %c0_i32_1 = arith.constant 0 : i32
    return %arg0, %arg1, %c0_i32, %c0_i32_0 : i32, i32, i32, i32
  }
}

</mosaic_0001>

<llo_original>
// kernel: tpu_custom_call.1
$region0: #{tpu_custom_call.1}
  #allocation0 [shape = 'u32[]', space=smem, size = 0x4, offset = 0x4, fixed_abs, tag = 'smem constant byte address 0x4 - core index']
  #allocation1 [shape = 'u32[72,128]{1,0:T(1,128)}', space=vmem, size = 0x9000, scoped, tag = 'internal scratch']
  %s0 = inlined_call_operand.vmem [shape: f32[2,5,256], index: 0, kind: input, shape index: {}]
  %s1 = inlined_call_operand.vmem [shape: f32[2,5,256], index: 1, kind: input, shape index: {}]
  %s2 = inlined_call_operand.vmem [shape: f32[2,1,3,5], index: 2, kind: output, shape index: {}]
  %s3 = sld [smem:[#allocation0]]
  $region41: #{tpu_custom_call.1} parent=0
    _
  %s5 = ssub.s32 1, %s3
  %s6 = scalar_select 0, %s5, %s3
  loop: start=0, step=1, limit=4
  $region2: #{tpu_custom_call.1} parent=0 // loop_pre_header
    _
  $region3: #{tpu_custom_call.1} parent=0 // loop_header
    %s8 = sphi 0, %s12
    %p9 = scmp.ge.s32.totalorder %s8, 4
    %s15 = sphi 0, %s27
    %s16 = sphi 0, %s23
    %s17 = sphi 0, %s15
    %s18 = sphi 0, %s16
    %s19 = sphi 0, %s17
    %s20 = sphi 0, %s18
    %s32 = sphi 0, %s34
    %s35 = sphi 0, %s32
    %s36 = sphi 0, %s35
    %s52 = sphi 0, %s36
    %s60 = sphi 0, %s62
    %s63 = sphi 0, %s60
    %s64 = sphi 0, %s63
    %s80 = sphi 0, %s64
    %s88 = sphi 0, %s90
    %s91 = sphi 0, %s88
    %s92 = sphi 0, %s91
    %s108 = sphi 0, %s92
  $region4: #{tpu_custom_call.1} parent=0 // loop_header_branch
    %11 = sbr.rel (%p9) target = $region8
  $region5: #{tpu_custom_call.1} parent=0 // loop_body
    %s13 = ssub.s32 %s8, 1
    %s14 = ssub.s32 %s8, 2
    %s21 = sadd.s32 1, %s16
    %p22 = scmp.ge.s32.totalorder %s21, 1
    %s23 = scalar_select %p22, 0, %s21
    %s24 = sadd.s32 1, %s15
    %s25 = scalar_select %p22, %s24, %s15
    %p26 = scmp.ge.s32.totalorder %s25, 2
    %s27 = scalar_select %p26, 0, %s25
    %s28 = ssub.s32 %s15, %s27
    %s29 = ssub.s32 %s16, %s23
    %s30 = sor.u32 %s28, %s29
    %p31 = scmp.eq.s32.totalorder %s30, 0
    %s33 = sadd.s32 %s32, 1
    %s34 = scalar_select %p31, %s32, %s33
    %p37 = pneg %p31
    %p38 = scmp.eq.s32.totalorder %s8, 1
    %p39 = por %p37, %p38
    %p40 = scmp.ne.s32.totalorder %s32, %s35
    %p41 = scmp.eq.s32.totalorder %s8, 0
    %p42 = por %p40, %p41
    %p43 = scmp.ne.s32.totalorder %s32, %s35
    %p44 = scmp.eq.s32.totalorder %s13, 1
    %p45 = por %p43, %p44
    %p46 = scmp.ne.s32.totalorder %s35, %s36
    %p47 = scmp.eq.s32.totalorder %s13, 0
    %p48 = por %p46, %p47
    %p49 = scmp.ne.s32.totalorder %s35, %s36
    %p50 = scmp.eq.s32.totalorder %s14, 1
    %p51 = por %p49, %p50
    %p53 = scmp.ne.s32.totalorder %s36, %s52
    %p54 = scmp.eq.s32.totalorder %s14, 0
    %p55 = por %p53, %p54
    %s56 = ssub.s32 %s15, %s27
    %s57 = ssub.s32 %s16, %s23
    %s58 = sor.u32 %s56, %s57
    %p59 = scmp.eq.s32.totalorder %s58, 0
    %s61 = sadd.s32 %s60, 1
    %s62 = scalar_select %p59, %s60, %s61
    %p65 = pneg %p59
    %p66 = scmp.eq.s32.totalorder %s8, 1
    %p67 = por %p65, %p66
    %p68 = scmp.ne.s32.totalorder %s60, %s63
    %p69 = scmp.eq.s32.totalorder %s8, 0
    %p70 = por %p68, %p69
    %p71 = scmp.ne.s32.totalorder %s60, %s63
    %p72 = scmp.eq.s32.totalorder %s13, 1
    %p73 = por %p71, %p72
    %p74 = scmp.ne.s32.totalorder %s63, %s64
    %p75 = scmp.eq.s32.totalorder %s13, 0
    %p76 = por %p74, %p75
    %p77 = scmp.ne.s32.totalorder %s63, %s64
    %p78 = scmp.eq.s32.totalorder %s14, 1
    %p79 = por %p77, %p78
    %p81 = scmp.ne.s32.totalorder %s64, %s80
    %p82 = scmp.eq.s32.totalorder %s14, 0
    %p83 = por %p81, %p82
    %s84 = ssub.s32 %s15, %s27
    %s85 = ssub.s32 %s16, %s23
    %s86 = sor.u32 %s84, %s85
    %p87 = scmp.eq.s32.totalorder %s86, 0
    %s89 = sadd.s32 %s88, 1
    %s90 = scalar_select %p87, %s88, %s89
    %p93 = pneg %p87
    %p94 = scmp.eq.s32.totalorder %s8, 1
    %p95 = por %p93, %p94
    %p96 = scmp.ne.s32.totalorder %s88, %s91
    %p97 = scmp.eq.s32.totalorder %s8, 0
    %p98 = por %p96, %p97
    %p99 = scmp.ne.s32.totalorder %s88, %s91
    %p100 = scmp.eq.s32.totalorder %s13, 1
    %p101 = por %p99, %p100
    %p102 = scmp.ne.s32.totalorder %s91, %s92
    %p103 = scmp.eq.s32.totalorder %s13, 0
    %p104 = por %p102, %p103
    %p105 = scmp.ne.s32.totalorder %s91, %s92
    %p106 = scmp.eq.s32.totalorder %s14, 1
    %p107 = por %p105, %p106
    %p109 = scmp.ne.s32.totalorder %s92, %s108
    %p110 = scmp.eq.s32.totalorder %s14, 0
    %p111 = por %p109, %p110
    %p112 = scmp.le.s32.totalorder 1, %s8
    %p113 = scmp.lt.s32.totalorder %s8, 3
    %p114 = pnand %p112, %p113
    %p115 = pneg %p114
    // Predicated region
    $region9: #{tpu_custom_call.1} parent=5 // pred_check
      _
    $region10: #{tpu_custom_call.1} parent=5 // pred_check_branch
      %117 = sbr.rel (%p114) target = $region12
    $region11: #{tpu_custom_call.1} parent=5 // pred_region
      %s118 = ssub.s32 %s8, 1
    $region12: #{tpu_custom_call.1} parent=5 // pred_fallthru
      _
    %p119 = scmp.lt.s32.totalorder %s8, 2
    // Predicated region
    $region13: #{tpu_custom_call.1} parent=5 // pred_check
      %p120 = pneg %p119
    $region14: #{tpu_custom_call.1} parent=5 // pred_check_branch
      %122 = sbr.rel (%p120) target = $region16
    $region15: #{tpu_custom_call.1} parent=5 // pred_region
      // Predicated region
      $region17: #{tpu_custom_call.1} parent=15 // pred_check
        %p123 = pneg %p42
      $region18: #{tpu_custom_call.1} parent=15 // pred_check_branch
        %125 = sbr.rel (%p123) target = $region20
      $region19: #{tpu_custom_call.1} parent=15 // pred_region
        %s126 = smul.u32 2, %s16
        %p127 = scmp.lt.s32.totalorder %s15, 1
        %s128 = scalar_select %p127, %s15, 1
        %p129 = scmp.lt.s32.totalorder %s126, 1
        %s130 = scalar_select %p129, %s126, 1
        %s131 = smul.addr %s128, 2
        %s132 = sadd.s32 %s130, %s131
        %s133 = smul.addr %s132, 8
        %s134 = scalar_lea.vmem %s0, %s133
        %s135 = smul.u32 2, %s16
      $region20: #{tpu_custom_call.1} parent=15 // pred_fallthru
        _
      // Predicated region
      $region21: #{tpu_custom_call.1} parent=15 // pred_check
        %p136 = pneg %p70
      $region22: #{tpu_custom_call.1} parent=15 // pred_check_branch
        %138 = sbr.rel (%p136) target = $region24
      $region23: #{tpu_custom_call.1} parent=15 // pred_region
        %s139 = smul.u32 2, %s16
        %p140 = scmp.lt.s32.totalorder %s15, 1
        %s141 = scalar_select %p140, %s15, 1
        %p142 = scmp.lt.s32.totalorder %s139, 1
        %s143 = scalar_select %p142, %s139, 1
        %s144 = smul.addr %s141, 2
        %s145 = sadd.s32 %s143, %s144
        %s146 = smul.addr %s145, 8
        %s147 = scalar_lea.vmem %s1, %s146
        %s148 = smul.u32 2, %s16
      $region24: #{tpu_custom_call.1} parent=15 // pred_fallthru
        _
    $region16: #{tpu_custom_call.1} parent=5 // pred_fallthru
      _
    %p149 = scmp.le.s32.totalorder 1, %s8
    %p150 = scmp.lt.s32.totalorder %s8, 3
    %p151 = pnand %p149, %p150
    %p152 = pneg %p151
    // Predicated region
    $region25: #{tpu_custom_call.1} parent=5 // pred_check
      _
    $region26: #{tpu_custom_call.1} parent=5 // pred_check_branch
      %154 = sbr.rel (%p151) target = $region28
    $region27: #{tpu_custom_call.1} parent=5 // pred_region
      %s155 = ssub.s32 %s8, 1
      %s156 = smul.u32 2, %s18
      %p157 = scmp.lt.s32.totalorder %s17, 1
      %s158 = scalar_select %p157, %s17, 1
      %p159 = scmp.lt.s32.totalorder %s156, 1
      %s160 = scalar_select %p159, %s156, 1
      %s161 = smul.addr %s158, 2
      %s162 = sadd.s32 %s160, %s161
      %s163 = smul.addr %s162, 8
      %s164 = scalar_lea.vmem %s0, %s163
      %p165 = pneg %p48
      %p166 = pneg %p45
      %s167 = smul.u32 2, %s18
      %p168 = scmp.lt.s32.totalorder %s17, 1
      %s169 = scalar_select %p168, %s17, 1
      %p170 = scmp.lt.s32.totalorder %s167, 1
      %s171 = scalar_select %p170, %s167, 1
      %s172 = smul.addr %s169, 2
      %s173 = sadd.s32 %s171, %s172
      %s174 = smul.addr %s173, 8
      %s175 = scalar_lea.vmem %s1, %s174
      %p176 = pneg %p76
      %p177 = pneg %p73
      %p178 = pneg %p104
      %p179 = pneg %p101
      %p180 = scmp.lt.s32.totalorder %s17, 1
      %s181 = scalar_select %p180, %s17, 1
      %p182 = scmp.lt.s32.totalorder %s18, 0
      %s183 = scalar_select %p182, %s18, 0
      %s184 = sadd.s32 %s183, %s181
      %s185 = smul.addr %s184, 4
      %s186 = scalar_lea.vmem %s2, %s185
      %s187 = smul.u32 2, %s18
      %p188 = scmp.lt.s32.totalorder %s17, 1
      %s189 = scalar_select %p188, %s17, 1
      %p190 = scmp.lt.s32.totalorder %s187, 1
      %s191 = scalar_select %p190, %s187, 1
      %s192 = smul.addr %s189, 2
      %s193 = sadd.s32 %s191, %s192
      %s194 = smul.addr %s193, 8
      %s195 = scalar_lea.vmem %s0, %s194
      %s196 = smul.u32 2, %s18
      %s197 = smul.u32 2, %s18
      %p198 = scmp.lt.s32.totalorder %s17, 1
      %s199 = scalar_select %p198, %s17, 1
      %p200 = scmp.lt.s32.totalorder %s197, 1
      %s201 = scalar_select %p200, %s197, 1
      %s202 = smul.addr %s199, 2
      %s203 = sadd.s32 %s201, %s202
      %s204 = smul.addr %s203, 8
      %s205 = scalar_lea.vmem %s1, %s204
      %s206 = smul.u32 2, %s18
      %p207 = scmp.lt.s32.totalorder %s17, 1
      %s208 = scalar_select %p207, %s17, 1
      %p209 = scmp.lt.s32.totalorder %s18, 0
      %s210 = scalar_select %p209, %s18, 0
      %s211 = sadd.s32 %s210, %s208
      %s212 = smul.addr %s211, 4
      %s213 = scalar_lea.vmem %s2, %s212
      %v214 = vld [vmem:[%s195] sm:$0x1f]
      %v215 = vld [vmem:[%s195 + $0x8] sm:$0x1f]
      %v216 = vld [vmem:[%s205] sm:$0x1f]
      %v217 = vld [vmem:[%s205 + $0x8] sm:$0x1f]
      %vm218 = vcmask 1044480
      %v219 = vsel %vm218, %v214, -inf
      %v220 = vrot.slane %v219, 4
      %v221 = vmax.f32 %v219, %v220
      %v222 = vrot.slane %v221, 2
      %v223 = vmax.f32 %v221, %v222
      %v224 = vrot.slane %v223, 1
      %v225 = vmax.f32 %v223, %v224
      %v226 = vsel %vm218, %v215, -inf
      %v227 = vrot.slane %v226, 4
      %v228 = vmax.f32 %v226, %v227
      %v229 = vrot.slane %v228, 2
      %v230 = vmax.f32 %v228, %v229
      %v231 = vrot.slane %v230, 1
      %v232 = vmax.f32 %v230, %v231
      %v233 = vsub.f32 %v214, %v225
      %v234 = vsub.f32 %v215, %v232
      %v235 = vmul.f32 %v233, 1.442695
      %v236 = vpow.pop %v235
      %v237 = vmul.f32 %v234, 1.442695
      %v238 = vpow.pop %v237
      %v239 = vsel %vm218, %v236, 0.0
      %v240 = vrot.slane %v239, 4
      %v241 = vadd.f32 %v239, %v240
      %v242 = vrot.slane %v241, 2
      %v243 = vadd.f32 %v241, %v242
      %v244 = vrot.slane %v243, 1
      %v245 = vadd.f32 %v243, %v244
      %v246 = vsel %vm218, %v238, 0.0
      %v247 = vrot.slane %v246, 4
      %v248 = vadd.f32 %v246, %v247
      %v249 = vrot.slane %v248, 2
      %v250 = vadd.f32 %v248, %v249
      %v251 = vrot.slane %v250, 1
      %v252 = vadd.f32 %v250, %v251
      %v253 = vrcp.pop %v245
      %v254 = vmul.f32 %v245, %v253
      %v255 = vsub.f32 1.0, %v254
      %v256 = vmul.f32 %v253, %v255
      %v257 = vadd.f32 %v253, %v256
      %vm258 = vweird.f32 %v245
      %vm259 = vweird.f32 %v253
      %vm260 = vmor %vm258, %vm259
      %v261 = vsel %vm260, %v253, %v257
      %v262 = vand.u32 2147483647, %v245
      %vm263 = vcmp.eq.f32.partialorder %v262, 8.507059e+37
      %v264 = vand.u32 %v245, 2147483648
      %v265 = vor.u32 1.1754944e-38, %v264
      %v266 = vsel %vm263, %v265, %v261
      %v267 = vmul.f32 1.0, %v266
      %v268 = vrcp.pop %v252
      %v269 = vmul.f32 %v252, %v268
      %v270 = vsub.f32 1.0, %v269
      %v271 = vmul.f32 %v268, %v270
      %v272 = vadd.f32 %v268, %v271
      %vm273 = vweird.f32 %v252
      %vm274 = vweird.f32 %v268
      %vm275 = vmor %vm273, %vm274
      %v276 = vsel %vm275, %v268, %v272
      %v277 = vand.u32 2147483647, %v252
      %vm278 = vcmp.eq.f32.partialorder %v277, 8.507059e+37
      %v279 = vand.u32 %v252, 2147483648
      %v280 = vor.u32 1.1754944e-38, %v279
      %v281 = vsel %vm278, %v280, %v276
      %v282 = vmul.f32 1.0, %v281
      %v283 = vmul.f32 %v236, %v267
      %v284 = vmul.f32 %v238, %v282
      %v285 = vmul.f32 %v283, %v216
      %v286 = vmul.f32 %v284, %v217
      %v287 = vsel %vm218, %v285, 0.0
      %v288 = vsel %vm218, %v286, 0.0
      %v289 = vadd.f32 %v287, %v288
      %290 = vadd.xlane.f32.xlu0 %v289
      %v291 = vpop.xlane.xlu0 %290
      %v293 = vlaneseq
      %v294 = vand.u32 %v293, 127
      %v295 = vperm.slane %v291, %v294
      %vm297 = vcmask 32768
      %298 = vst.msk [vmem:[%s213] sm:$0x1] %vm297, %v295
      %v299 = vmul.f32 %v283, %v283
      %v300 = vmul.f32 %v284, %v284
      %v301 = vsel %vm218, %v299, 0.0
      %v302 = vsel %vm218, %v300, 0.0
      %v303 = vadd.f32 %v301, %v302
      %304 = vadd.xlane.f32.xlu0 %v303
      %v305 = vpop.xlane.xlu0 %304
      %v307 = vperm.slane %v305, %v294
      %309 = vst.msk [vmem:[%s213 + $0x1] sm:$0x1] %vm297, %v307
      %v310 = vsel %vm218, %v216, 0.0
      %v311 = vsel %vm218, %v217, 0.0
      %v312 = vadd.f32 %v310, %v311
      %313 = vadd.xlane.f32.xlu0 %v312
      %v314 = vpop.xlane.xlu0 %313
      %v316 = vperm.slane %v314, %v294
      %318 = vst.msk [vmem:[%s213 + $0x2] sm:$0x1] %vm297, %v316
      %p319 = scmp.lt.s32.totalorder %s17, 1
      %s320 = scalar_select %p319, %s17, 1
      %p321 = scmp.lt.s32.totalorder %s18, 0
      %s322 = scalar_select %p321, %s18, 0
      %s323 = sadd.s32 %s322, %s320
      %s324 = smul.addr %s323, 4
      %s325 = scalar_lea.vmem %s2, %s324
      // Predicated region
      $region29: #{tpu_custom_call.1} parent=27 // pred_check
        %p326 = pneg %p101
      $region30: #{tpu_custom_call.1} parent=27 // pred_check_branch
        %328 = sbr.rel (%p326) target = $region32
      $region31: #{tpu_custom_call.1} parent=27 // pred_region
        _
      $region32: #{tpu_custom_call.1} parent=27 // pred_fallthru
        _
    $region28: #{tpu_custom_call.1} parent=5 // pred_fallthru
      _
    %p329 = scmp.le.s32.totalorder 2, %s8
    // Predicated region
    $region33: #{tpu_custom_call.1} parent=5 // pred_check
      %p330 = pneg %p329
    $region34: #{tpu_custom_call.1} parent=5 // pred_check_branch
      %332 = sbr.rel (%p330) target = $region36
    $region35: #{tpu_custom_call.1} parent=5 // pred_region
      %s333 = ssub.s32 %s8, 2
      // Predicated region
      $region37: #{tpu_custom_call.1} parent=35 // pred_check
        %p334 = pneg %p107
      $region38: #{tpu_custom_call.1} parent=35 // pred_check_branch
        %336 = sbr.rel (%p334) target = $region40
      $region39: #{tpu_custom_call.1} parent=35 // pred_region
        %p337 = scmp.lt.s32.totalorder %s19, 1
        %s338 = scalar_select %p337, %s19, 1
        %p339 = scmp.lt.s32.totalorder %s20, 0
        %s340 = scalar_select %p339, %s20, 0
        %s341 = sadd.s32 %s340, %s338
        %s342 = smul.addr %s341, 4
        %s343 = scalar_lea.vmem %s2, %s342
      $region40: #{tpu_custom_call.1} parent=35 // pred_fallthru
        _
    $region36: #{tpu_custom_call.1} parent=5 // pred_fallthru
      _
  $region6: #{tpu_custom_call.1} parent=0 // loop_footer
    %s12 = sadd.s32 1, %s8
  $region7: #{tpu_custom_call.1} parent=0 // loop_footer_branch
    %7 = sbr.rel target = $region3
  $region8: #{tpu_custom_call.1} parent=0 // loop_exit
    _

</llo_original>
